<compile_context>
chip_gen: v7x
topology: tpu7x:2x2x1
jax: 0.10.0
libtpu: 0.0.40
codegen_flags: <defaults>
</compile_context>

<pallas_src>
import jax
import jax.numpy as jnp
from jax.experimental import pallas as pl
from jax.experimental.pallas import tpu as pltpu


def _dft_mats(n: int):
    """Real/imag parts of the (symmetric) n-point DFT matrix F[k,m]=exp(-2πikm/n)."""
    k = jnp.arange(n, dtype=jnp.float32)
    ang = -2.0 * jnp.pi * jnp.outer(k, k) / n
    return jnp.cos(ang).astype(jnp.float32), jnp.sin(ang).astype(jnp.float32)


def _pool_mat(full: int, pooled: int, s: int):
    """Averaging matrix P (pooled, full) with P[i, s*i + k] = 1/s."""
    rows = jnp.arange(pooled)
    cols = jnp.arange(full)
    return ((cols[None, :] // s) == rows[:, None]).astype(jnp.float32) / float(s)


def _downsampling_kernel(x_ref, acat_ref, bcat_ref, gwcat_ref, fhcat_ref,
                         w_ref, o_ref):
    f32 = jnp.float32
    dot = lambda u, v: jnp.dot(u, v, preferred_element_type=f32)

    Hp = acat_ref.shape[0] // 2
    GWp = bcat_ref.shape[1] // 2

    x = x_ref[0, 0]                                   # (H, GW) lane-dense slab

    # ---- forward height (avg-pool fused): [Ar; Ai] @ X, one push ----
    s_hat = dot(acat_ref[...], x)                     # (2Hp, GW) = [Sr; Si]

    # ---- forward width (avg-pool fused): all 4 re/im products in one push ----
    q = dot(s_hat, bcat_ref[...])                     # (2Hp, 2GWp)
    xf_r = q[:Hp, :GWp] - q[Hp:, GWp:]                # Sr@Br - Si@Bi
    xf_i = q[:Hp, GWp:] + q[Hp:, :GWp]                # Sr@Bi + Si@Br

    # ---- per-channel complex weight (1/(Hp*Wp) folded host-side), VPU ----
    wr = w_ref[0, 0]                                  # (Hp, GWp)
    wi = w_ref[1, 0]
    yr = xf_r * wr - xf_i * wi
    yi = xf_r * wi + xf_i * wr

    # ---- inverse width (conj DFT, block-diag per image): one push ----
    y_hat = jnp.concatenate([yr, yi], axis=0)         # (2Hp, GWp)
    q2 = dot(y_hat, gwcat_ref[...])                   # (2Hp, 2GWp)
    zr = q2[:Hp, :GWp] - q2[Hp:, GWp:]
    zi = q2[:Hp, GWp:] + q2[Hp:, :GWp]

    # ---- inverse height, real part only: [Fhr | Fhi] @ [Zr; Zi], one push ----
    z_hat = jnp.concatenate([zr, zi], axis=0)         # (2Hp, GWp)
    out = dot(fhcat_ref[...], z_hat)                  # (Hp, GWp)

    o_ref[0, 0] = out.astype(o_ref.dtype)


def downsampling_forward(x, w_real, w_imag, scale_factor: int = 2,
                         *, cblk: int | None = None,
                         vmem_limit_bytes: int | None = None):
    """x: (B, C, H, W) f32; w_real/w_imag: (C, H//s, W//s) f32."""
    B, C, H, W = x.shape
    s = scale_factor
    assert H % s == 0 and W % s == 0
    Hp, Wp = H // s, W // s
    assert w_real.shape == (C, Hp, Wp) and w_imag.shape == (C, Hp, Wp)
    # Keep sublane-aligned row slices / stores (no in-kernel relayout copies).
    assert H % 8 == 0 and Hp % 8 == 0, "H and H//s must be multiples of 8"

    if cblk is None:
        cblk = C            # demo-sized; production: pick cblk so cblk*Wp % 128 == 0
    assert C % cblk == 0
    nC = C // cblk
    GW, GWp = cblk * W, cblk * Wp

    # ---- lane-dense input slab: (B, nC, H, cblk*W), lane index = c_in_blk*W + w
    x_l = (x.reshape(B, nC, cblk, H, W)
             .transpose(0, 1, 3, 2, 4)
             .reshape(B, nC, H, GW))

    # ---- host-side constants (pool fused into forward DFTs) ----
    ph = _pool_mat(H, Hp, s)                          # (Hp, H)
    pw = _pool_mat(W, Wp, s)                          # (Wp, W)
    fhr, fhi = _dft_mats(Hp)                          # (Hp, Hp)
    fwr, fwi = _dft_mats(Wp)                          # (Wp, Wp)

    acat = jnp.concatenate([fhr @ ph, fhi @ ph], axis=0)            # (2Hp, H)
    eye = jnp.eye(cblk, dtype=jnp.float32)
    bcat = jnp.concatenate([jnp.kron(eye, pw.T @ fwr),
                            jnp.kron(eye, pw.T @ fwi)], axis=1)     # (GW, 2GWp)
    # inverse width operator = conj(FW) = Fwr - i*Fwi (block-diag per image)
    gwcat = jnp.concatenate([jnp.kron(eye, fwr),
                             jnp.kron(eye, -fwi)], axis=1)          # (GWp, 2GWp)
    # inverse height, real part only: real(conj(FH) @ Z) = Fhr@Zr + Fhi@Zi
    fhcat = jnp.concatenate([fhr, fhi], axis=1)                     # (Hp, 2Hp)

    # weight as a lane slab matching the x layout, 1/(Hp*Wp) folded in
    def w_slab(w):
        return (w.reshape(nC, cblk, Hp, Wp)
                  .transpose(0, 2, 1, 3)
                  .reshape(nC, Hp, GWp))
    wpk = jnp.stack([w_slab(w_real), w_slab(w_imag)]) * (1.0 / float(Hp * Wp))

    const2 = lambda shp: pl.BlockSpec(shp, lambda i, j: (0, 0))

    cp = dict(dimension_semantics=("parallel", "parallel"))
    if vmem_limit_bytes is not None:
        cp["vmem_limit_bytes"] = vmem_limit_bytes

    out = pl.pallas_call(
        _downsampling_kernel,
        out_shape=jax.ShapeDtypeStruct((B, nC, Hp, GWp), x.dtype),
        grid=(B, nC),
        in_specs=[
            pl.BlockSpec((1, 1, H, GW), lambda i, j: (i, j, 0, 0)),     # x slab
            const2((2 * Hp, H)),                                        # [Ar; Ai]
            const2((GW, 2 * GWp)),                                      # [Bd(Br)|Bd(Bi)]
            const2((GWp, 2 * GWp)),                                     # [Bd(Fwr)|Bd(-Fwi)]
            const2((Hp, 2 * Hp)),                                       # [Fhr|Fhi]
            pl.BlockSpec((2, 1, Hp, GWp), lambda i, j: (0, j, 0, 0)),   # weight slab
        ],
        out_specs=pl.BlockSpec((1, 1, Hp, GWp), lambda i, j: (i, j, 0, 0)),
        compiler_params=pltpu.CompilerParams(**cp),
    )(x_l, acat, bcat, gwcat, fhcat, wpk)

    # back to (B, C, Hp, Wp)
    return (out.reshape(B, nC, Hp, cblk, Wp)
               .transpose(0, 1, 3, 2, 4)
               .reshape(B, C, Hp, Wp))


if __name__ == "__main__":
    B, C, H, W = 2, 4, 16, 16
    s = 2
    Hp, Wp = H // s, W // s

    key = jax.random.PRNGKey(0)
    kx, kr, ki = jax.random.split(key, 3)
    x = jax.random.normal(kx, (B, C, H, W), dtype=jnp.float32)
    # deterministic parameter init for the Fourier conv's complex weight
    w_real = jax.random.normal(kr, (C, Hp, Wp), dtype=jnp.float32)
    w_imag = jax.random.normal(ki, (C, Hp, Wp), dtype=jnp.float32)

    out = downsampling_forward(x, w_real, w_imag, scale_factor=s)
    out = jax.block_until_ready(out)

    # pure-JAX reference (AvgPool2d + fft2 * W + ifft2.real)
    pooled_ref = x.reshape(B, C, Hp, s, Wp, s).mean(axis=(3, 5))
    w_c = (w_real + 1j * w_imag)[None]
    ref = jnp.fft.ifft2(jnp.fft.fft2(pooled_ref) * w_c).real.astype(jnp.float32)

    assert out.shape == (B, C, Hp, Wp)
    assert jnp.allclose(out, ref, atol=2e-3, rtol=2e-3)
    print("KERNEL_OK")
</pallas_src>

<mosaic_0001>
module attributes {stable_mosaic.version = 11 : i64} {
  func.func @_downsampling_kernel(%arg0: i32, %arg1: i32, %arg2: memref<1x1x16x64xf32, #tpu.memory_space<vmem>>, %arg3: memref<16x16xf32, #tpu.memory_space<vmem>>, %arg4: memref<64x64xf32, #tpu.memory_space<vmem>>, %arg5: memref<32x64xf32, #tpu.memory_space<vmem>>, %arg6: memref<8x16xf32, #tpu.memory_space<vmem>>, %arg7: memref<2x1x8x32xf32, #tpu.memory_space<vmem>>, %arg8: memref<1x1x8x32xf32, #tpu.memory_space<vmem>>) attributes {dimension_semantics = [#tpu.dimension_semantics<parallel>, #tpu.dimension_semantics<parallel>], iteration_bounds = array<i64: 2, 1>, scalar_prefetch = 0 : i64, scratch_operands = 0 : i64, tpu.core_type = #tpu.core_type<tc>, window_params = [{transform_indices = @transform_0, window_bounds = array<i64: 1, 1, 16, 64>}, {pipeline_mode = #tpu.pipeline_mode<synchronous>, transform_indices = @transform_1, window_bounds = array<i64: 16, 16>}, {pipeline_mode = #tpu.pipeline_mode<synchronous>, transform_indices = @transform_2, window_bounds = array<i64: 64, 64>}, {pipeline_mode = #tpu.pipeline_mode<synchronous>, transform_indices = @transform_3, window_bounds = array<i64: 32, 64>}, {pipeline_mode = #tpu.pipeline_mode<synchronous>, transform_indices = @transform_4, window_bounds = array<i64: 8, 16>}, {transform_indices = @transform_5, window_bounds = array<i64: 2, 1, 8, 32>}, {transform_indices = @transform_6, window_bounds = array<i64: 1, 1, 8, 32>}]} {
    %c0 = arith.constant 0 : index
    %c0_0 = arith.constant 0 : index
    %c0_1 = arith.constant 0 : index
    %c0_2 = arith.constant 0 : index
    %0 = vector.load %arg2[%c0, %c0_0, %c0_1, %c0_2] : memref<1x1x16x64xf32, #tpu.memory_space<vmem>>, vector<1x1x16x64xf32>
    %1 = vector.shape_cast %0 : vector<1x1x16x64xf32> to vector<16x64xf32>
    %c0_3 = arith.constant 0 : index
    %c0_4 = arith.constant 0 : index
    %2 = vector.load %arg3[%c0_3, %c0_4] : memref<16x16xf32, #tpu.memory_space<vmem>>, vector<16x16xf32>
    %cst = arith.constant dense<0.000000e+00> : vector<16x64xf32>
    %3 = tpu.matmul %2, %1, %cst {dimension_numbers = #tpu.dot_dimension_numbers<[1], [0], [0], [1], [0, 0, 1, 1], [], []>} : vector<16x16xf32>, vector<16x64xf32>, vector<16x64xf32> -> vector<16x64xf32>
    %c0_5 = arith.constant 0 : index
    %c0_6 = arith.constant 0 : index
    %4 = vector.load %arg4[%c0_5, %c0_6] : memref<64x64xf32, #tpu.memory_space<vmem>>, vector<64x64xf32>
    %cst_7 = arith.constant dense<0.000000e+00> : vector<16x64xf32>
    %5 = tpu.matmul %3, %4, %cst_7 {dimension_numbers = #tpu.dot_dimension_numbers<[1], [0], [0], [1], [0, 0, 1, 1], [], []>} : vector<16x64xf32>, vector<64x64xf32>, vector<16x64xf32> -> vector<16x64xf32>
    %6 = vector.extract_strided_slice %5 {offsets = [0, 0], sizes = [8, 32], strides = [1, 1]} : vector<16x64xf32> to vector<8x32xf32>
    %7 = vector.extract_strided_slice %5 {offsets = [8, 32], sizes = [8, 32], strides = [1, 1]} : vector<16x64xf32> to vector<8x32xf32>
    %8 = arith.subf %6, %7 : vector<8x32xf32>
    %9 = vector.extract_strided_slice %5 {offsets = [0, 32], sizes = [8, 32], strides = [1, 1]} : vector<16x64xf32> to vector<8x32xf32>
    %10 = vector.extract_strided_slice %5 {offsets = [8, 0], sizes = [8, 32], strides = [1, 1]} : vector<16x64xf32> to vector<8x32xf32>
    %11 = arith.addf %9, %10 : vector<8x32xf32>
    %c0_8 = arith.constant 0 : index
    %c0_9 = arith.constant 0 : index
    %c0_10 = arith.constant 0 : index
    %c0_11 = arith.constant 0 : index
    %12 = vector.load %arg7[%c0_8, %c0_9, %c0_10, %c0_11] : memref<2x1x8x32xf32, #tpu.memory_space<vmem>>, vector<1x1x8x32xf32>
    %13 = vector.shape_cast %12 : vector<1x1x8x32xf32> to vector<8x32xf32>
    %c1 = arith.constant 1 : index
    %c0_12 = arith.constant 0 : index
    %c0_13 = arith.constant 0 : index
    %c0_14 = arith.constant 0 : index
    %14 = vector.load %arg7[%c1, %c0_12, %c0_13, %c0_14] : memref<2x1x8x32xf32, #tpu.memory_space<vmem>>, vector<1x1x8x32xf32>
    %15 = vector.shape_cast %14 : vector<1x1x8x32xf32> to vector<8x32xf32>
    %16 = arith.mulf %8, %13 : vector<8x32xf32>
    %17 = arith.mulf %11, %15 : vector<8x32xf32>
    %18 = arith.subf %16, %17 : vector<8x32xf32>
    %19 = arith.mulf %8, %15 : vector<8x32xf32>
    %20 = arith.mulf %11, %13 : vector<8x32xf32>
    %21 = arith.addf %19, %20 : vector<8x32xf32>
    %22 = tpu.concatenate %18, %21 in 0 : vector<8x32xf32>, vector<8x32xf32> -> vector<16x32xf32>
    %c0_15 = arith.constant 0 : index
    %c0_16 = arith.constant 0 : index
    %23 = vector.load %arg5[%c0_15, %c0_16] : memref<32x64xf32, #tpu.memory_space<vmem>>, vector<32x64xf32>
    %cst_17 = arith.constant dense<0.000000e+00> : vector<16x64xf32>
    %24 = tpu.matmul %22, %23, %cst_17 {dimension_numbers = #tpu.dot_dimension_numbers<[1], [0], [0], [1], [0, 0, 1, 1], [], []>} : vector<16x32xf32>, vector<32x64xf32>, vector<16x64xf32> -> vector<16x64xf32>
    %25 = vector.extract_strided_slice %24 {offsets = [0, 0], sizes = [8, 32], strides = [1, 1]} : vector<16x64xf32> to vector<8x32xf32>
    %26 = vector.extract_strided_slice %24 {offsets = [8, 32], sizes = [8, 32], strides = [1, 1]} : vector<16x64xf32> to vector<8x32xf32>
    %27 = arith.subf %25, %26 : vector<8x32xf32>
    %28 = vector.extract_strided_slice %24 {offsets = [0, 32], sizes = [8, 32], strides = [1, 1]} : vector<16x64xf32> to vector<8x32xf32>
    %29 = vector.extract_strided_slice %24 {offsets = [8, 0], sizes = [8, 32], strides = [1, 1]} : vector<16x64xf32> to vector<8x32xf32>
    %30 = arith.addf %28, %29 : vector<8x32xf32>
    %31 = tpu.concatenate %27, %30 in 0 : vector<8x32xf32>, vector<8x32xf32> -> vector<16x32xf32>
    %c0_18 = arith.constant 0 : index
    %c0_19 = arith.constant 0 : index
    %32 = vector.load %arg6[%c0_18, %c0_19] : memref<8x16xf32, #tpu.memory_space<vmem>>, vector<8x16xf32>
    %cst_20 = arith.constant dense<0.000000e+00> : vector<8x32xf32>
    %33 = tpu.matmul %32, %31, %cst_20 {dimension_numbers = #tpu.dot_dimension_numbers<[1], [0], [0], [1], [0, 0, 1, 1], [], []>} : vector<8x16xf32>, vector<16x32xf32>, vector<8x32xf32> -> vector<8x32xf32>
    %c0_21 = arith.constant 0 : index
    %c0_22 = arith.constant 0 : index
    %c0_23 = arith.constant 0 : index
    %c0_24 = arith.constant 0 : index
    %34 = vector.load %arg8[%c0_21, %c0_22, %c0_23, %c0_24] : memref<1x1x8x32xf32, #tpu.memory_space<vmem>>, vector<1x1x8x32xf32>
    %35 = vector.shape_cast %34 : vector<1x1x8x32xf32> to vector<8x32xf32>
    %36 = vector.shape_cast %33 : vector<8x32xf32> to vector<1x1x8x32xf32>
    tpu.vector_store %arg8[%c0_21, %c0_22, %c0_23, %c0_24], %36 {strides = array<i32>} : memref<1x1x8x32xf32, #tpu.memory_space<vmem>>, vector<1x1x8x32xf32>,
    return
  }
  func.func @transform_0(%arg0: i32, %arg1: i32) -> (i32, i32, i32, i32) {
    %c0_i32 = arith.constant 0 : i32
    %c0_i32_0 = arith.constant 0 : i32
    %c0_i32_1 = arith.constant 0 : i32
    return %arg0, %arg1, %c0_i32, %c0_i32_0 : i32, i32, i32, i32
  }
  func.func @transform_1(%arg0: i32, %arg1: i32) -> (i32, i32) {
    %c0_i32 = arith.constant 0 : i32
    %c0_i32_0 = arith.constant 0 : i32
    %c0_i32_1 = arith.constant 0 : i32
    return %c0_i32, %c0_i32_0 : i32, i32
  }
  func.func @transform_2(%arg0: i32, %arg1: i32) -> (i32, i32) {
    %c0_i32 = arith.constant 0 : i32
    %c0_i32_0 = arith.constant 0 : i32
    %c0_i32_1 = arith.constant 0 : i32
    return %c0_i32, %c0_i32_0 : i32, i32
  }
  func.func @transform_3(%arg0: i32, %arg1: i32) -> (i32, i32) {
    %c0_i32 = arith.constant 0 : i32
    %c0_i32_0 = arith.constant 0 : i32
    %c0_i32_1 = arith.constant 0 : i32
    return %c0_i32, %c0_i32_0 : i32, i32
  }
  func.func @transform_4(%arg0: i32, %arg1: i32) -> (i32, i32) {
    %c0_i32 = arith.constant 0 : i32
    %c0_i32_0 = arith.constant 0 : i32
    %c0_i32_1 = arith.constant 0 : i32
    return %c0_i32, %c0_i32_0 : i32, i32
  }
  func.func @transform_5(%arg0: i32, %arg1: i32) -> (i32, i32, i32, i32) {
    %c0_i32 = arith.constant 0 : i32
    %c0_i32_0 = arith.constant 0 : i32
    %c0_i32_1 = arith.constant 0 : i32
    %c0_i32_2 = arith.constant 0 : i32
    return %c0_i32, %arg1, %c0_i32_0, %c0_i32_1 : i32, i32, i32, i32
  }
  func.func @transform_6(%arg0: i32, %arg1: i32) -> (i32, i32, i32, i32) {
    %c0_i32 = arith.constant 0 : i32
    %c0_i32_0 = arith.constant 0 : i32
    %c0_i32_1 = arith.constant 0 : i32
    return %arg0, %arg1, %c0_i32, %c0_i32_0 : i32, i32, i32, i32
  }
}

</mosaic_0001>

<llo_original>
// kernel: tpu_custom_call.1
$region0: #{tpu_custom_call.1}
  #allocation0 [shape = 'u32[]', space=smem, size = 0x4, offset = 0x4, fixed_abs, tag = 'smem constant byte address 0x4 - core index']
  #allocation1 [shape = 'u32[144,128]{1,0:T(1,128)}', space=vmem, size = 0x12000, scoped, tag = 'internal scratch']
  %s0 = inlined_call_operand.hbm [shape: f32[2,1,16,64], index: 0, kind: input, shape index: {}]
  %s1 = inlined_call_operand.hbm [shape: f32[16,16], index: 1, kind: input, shape index: {}]
  %s2 = inlined_call_operand.hbm [shape: f32[64,64], index: 2, kind: input, shape index: {}]
  %s3 = inlined_call_operand.hbm [shape: f32[32,64], index: 3, kind: input, shape index: {}]
  %s4 = inlined_call_operand.hbm [shape: f32[8,16], index: 4, kind: input, shape index: {}]
  %s5 = inlined_call_operand.vmem [shape: f32[2,1,8,32], index: 5, kind: input, shape index: {}]
  %s6 = inlined_call_operand.hbm [shape: f32[2,1,8,32], index: 6, kind: output, shape index: {}]
  %s7 = sld [smem:[#allocation0]]
  $region77: #{tpu_custom_call.1} parent=0
    _
  %s9 = ssub.s32 1, %s7
  %s10 = scalar_select 0, %s9, %s7
  $region1: #{tpu_custom_call.1} parent=0
    #allocation2 [shape = 'u8[16384]{0}', space=vmem, size = 0x4000, scoped, tag = 'input window, operand 0']
    #allocation3 [shape = 's32[2]{0}', space=sflag, size = 0x8, scoped, tag = 'scoped memory for tpu_custom_call.1']
    #allocation4 [shape = 's32[2]{0}', space=sflag, size = 0x8, scoped, tag = 'scoped memory for tpu_custom_call.1']
    #allocation5 [shape = 'u8[8192]{0}', space=vmem, size = 0x2000, scoped, tag = 'input window, operand 1, single buffered']
    #allocation6 [shape = 's32[1]{0}', space=sflag, size = 0x4, scoped, tag = 'scoped memory for tpu_custom_call.1']
    #allocation7 [shape = 'u8[32768]{0}', space=vmem, size = 0x8000, scoped, tag = 'input window, operand 2, single buffered']
    #allocation8 [shape = 'u8[16384]{0}', space=vmem, size = 0x4000, scoped, tag = 'input window, operand 3, single buffered']
    #allocation9 [shape = 's32[1]{0}', space=sflag, size = 0x4, scoped, tag = 'scoped memory for tpu_custom_call.1']
    #allocation10 [shape = 'u8[4096]{0}', space=vmem, size = 0x1000, scoped, tag = 'input window, operand 4, single buffered']
    #allocation11 [shape = 'u8[8192]{0}', space=vmem, size = 0x2000, scoped, tag = 'output window, operand 0']
    %11 = vsyncpa [#allocation3], 0
    %s12 = scalar_lea.sflag [#allocation3], 1
    %13 = vsyncpa %s12, 0
    %14 = vsyncpa [#allocation6], 0
    %15 = vsyncpa [#allocation9], 0
    %16 = vsyncpa [#allocation4], 0
    %s17 = scalar_lea.sflag [#allocation4], 1
    %18 = vsyncpa %s17, 0
    loop: start=0, step=1, limit=4
    $region2: #{tpu_custom_call.1} parent=1 // loop_pre_header
      _
    $region3: #{tpu_custom_call.1} parent=1 // loop_header
      %s20 = sphi 0, %s24
      %p21 = scmp.ge.s32.totalorder %s20, 4
      %s27 = sphi 0, %s39
      %s28 = sphi 0, %s35
      %s29 = sphi 0, %s27
      %s30 = sphi 0, %s28
      %s31 = sphi 0, %s29
      %s32 = sphi 0, %s30
      %s44 = sphi 0, %s46
      %s47 = sphi 0, %s44
      %s48 = sphi 0, %s47
      %s64 = sphi 0, %s48
      %s68 = sphi 0, %s68
      %s70 = sphi 0, %s68
      %s71 = sphi 0, %s70
      %s85 = sphi 0, %s71
      %s89 = sphi 0, %s89
      %s91 = sphi 0, %s89
      %s92 = sphi 0, %s91
      %s106 = sphi 0, %s92
      %s110 = sphi 0, %s110
      %s112 = sphi 0, %s110
      %s113 = sphi 0, %s112
      %s127 = sphi 0, %s113
      %s131 = sphi 0, %s131
      %s133 = sphi 0, %s131
      %s134 = sphi 0, %s133
      %s148 = sphi 0, %s134
      %s154 = sphi 0, %s156
      %s157 = sphi 0, %s154
      %s158 = sphi 0, %s157
      %s174 = sphi 0, %s158
      %s182 = sphi 0, %s184
      %s185 = sphi 0, %s182
      %s186 = sphi 0, %s185
      %s202 = sphi 0, %s186
    $region4: #{tpu_custom_call.1} parent=1 // loop_header_branch
      %23 = sbr.rel (%p21) target = $region8
    $region5: #{tpu_custom_call.1} parent=1 // loop_body
      %s25 = ssub.s32 %s20, 1
      %s26 = ssub.s32 %s20, 2
      %s33 = sadd.s32 1, %s28
      %p34 = scmp.ge.s32.totalorder %s33, 1
      %s35 = scalar_select %p34, 0, %s33
      %s36 = sadd.s32 1, %s27
      %s37 = scalar_select %p34, %s36, %s27
      %p38 = scmp.ge.s32.totalorder %s37, 2
      %s39 = scalar_select %p38, 0, %s37
      %s40 = ssub.s32 %s27, %s39
      %s41 = ssub.s32 %s28, %s35
      %s42 = sor.u32 %s40, %s41
      %p43 = scmp.eq.s32.totalorder %s42, 0
      %s45 = sadd.s32 %s44, 1
      %s46 = scalar_select %p43, %s44, %s45
      %p49 = pneg %p43
      %p50 = scmp.eq.s32.totalorder %s20, 1
      %p51 = por %p49, %p50
      %p52 = scmp.ne.s32.totalorder %s44, %s47
      %p53 = scmp.eq.s32.totalorder %s20, 0
      %p54 = por %p52, %p53
      %p55 = scmp.ne.s32.totalorder %s44, %s47
      %p56 = scmp.eq.s32.totalorder %s25, 1
      %p57 = por %p55, %p56
      %p58 = scmp.ne.s32.totalorder %s47, %s48
      %p59 = scmp.eq.s32.totalorder %s25, 0
      %p60 = por %p58, %p59
      %p61 = scmp.ne.s32.totalorder %s47, %s48
      %p62 = scmp.eq.s32.totalorder %s26, 1
      %p63 = por %p61, %p62
      %p65 = scmp.ne.s32.totalorder %s48, %s64
      %p66 = scmp.eq.s32.totalorder %s26, 0
      %p67 = por %p65, %p66
      %s69 = sadd.s32 %s68, 1
      %p72 = scmp.eq.s32.totalorder %s20, 1
      %p73 = scmp.ne.s32.totalorder %s68, %s70
      %p74 = scmp.eq.s32.totalorder %s20, 0
      %p75 = por %p73, %p74
      %p76 = scmp.ne.s32.totalorder %s68, %s70
      %p77 = scmp.eq.s32.totalorder %s25, 1
      %p78 = por %p76, %p77
      %p79 = scmp.ne.s32.totalorder %s70, %s71
      %p80 = scmp.eq.s32.totalorder %s25, 0
      %p81 = por %p79, %p80
      %p82 = scmp.ne.s32.totalorder %s70, %s71
      %p83 = scmp.eq.s32.totalorder %s26, 1
      %p84 = por %p82, %p83
      %p86 = scmp.ne.s32.totalorder %s71, %s85
      %p87 = scmp.eq.s32.totalorder %s26, 0
      %p88 = por %p86, %p87
      %s90 = sadd.s32 %s89, 1
      %p93 = scmp.eq.s32.totalorder %s20, 1
      %p94 = scmp.ne.s32.totalorder %s89, %s91
      %p95 = scmp.eq.s32.totalorder %s20, 0
      %p96 = por %p94, %p95
      %p97 = scmp.ne.s32.totalorder %s89, %s91
      %p98 = scmp.eq.s32.totalorder %s25, 1
      %p99 = por %p97, %p98
      %p100 = scmp.ne.s32.totalorder %s91, %s92
      %p101 = scmp.eq.s32.totalorder %s25, 0
      %p102 = por %p100, %p101
      %p103 = scmp.ne.s32.totalorder %s91, %s92
      %p104 = scmp.eq.s32.totalorder %s26, 1
      %p105 = por %p103, %p104
      %p107 = scmp.ne.s32.totalorder %s92, %s106
      %p108 = scmp.eq.s32.totalorder %s26, 0
      %p109 = por %p107, %p108
      %s111 = sadd.s32 %s110, 1
      %p114 = scmp.eq.s32.totalorder %s20, 1
      %p115 = scmp.ne.s32.totalorder %s110, %s112
      %p116 = scmp.eq.s32.totalorder %s20, 0
      %p117 = por %p115, %p116
      %p118 = scmp.ne.s32.totalorder %s110, %s112
      %p119 = scmp.eq.s32.totalorder %s25, 1
      %p120 = por %p118, %p119
      %p121 = scmp.ne.s32.totalorder %s112, %s113
      %p122 = scmp.eq.s32.totalorder %s25, 0
      %p123 = por %p121, %p122
      %p124 = scmp.ne.s32.totalorder %s112, %s113
      %p125 = scmp.eq.s32.totalorder %s26, 1
      %p126 = por %p124, %p125
      %p128 = scmp.ne.s32.totalorder %s113, %s127
      %p129 = scmp.eq.s32.totalorder %s26, 0
      %p130 = por %p128, %p129
      %s132 = sadd.s32 %s131, 1
      %p135 = scmp.eq.s32.totalorder %s20, 1
      %p136 = scmp.ne.s32.totalorder %s131, %s133
      %p137 = scmp.eq.s32.totalorder %s20, 0
      %p138 = por %p136, %p137
      %p139 = scmp.ne.s32.totalorder %s131, %s133
      %p140 = scmp.eq.s32.totalorder %s25, 1
      %p141 = por %p139, %p140
      %p142 = scmp.ne.s32.totalorder %s133, %s134
      %p143 = scmp.eq.s32.totalorder %s25, 0
      %p144 = por %p142, %p143
      %p145 = scmp.ne.s32.totalorder %s133, %s134
      %p146 = scmp.eq.s32.totalorder %s26, 1
      %p147 = por %p145, %p146
      %p149 = scmp.ne.s32.totalorder %s134, %s148
      %p150 = scmp.eq.s32.totalorder %s26, 0
      %p151 = por %p149, %p150
      %s152 = ssub.s32 %s28, %s35
      %p153 = scmp.eq.s32.totalorder %s152, 0
      %s155 = sadd.s32 %s154, 1
      %s156 = scalar_select %p153, %s154, %s155
      %p159 = pneg %p153
      %p160 = scmp.eq.s32.totalorder %s20, 1
      %p161 = por %p159, %p160
      %p162 = scmp.ne.s32.totalorder %s154, %s157
      %p163 = scmp.eq.s32.totalorder %s20, 0
      %p164 = por %p162, %p163
      %p165 = scmp.ne.s32.totalorder %s154, %s157
      %p166 = scmp.eq.s32.totalorder %s25, 1
      %p167 = por %p165, %p166
      %p168 = scmp.ne.s32.totalorder %s157, %s158
      %p169 = scmp.eq.s32.totalorder %s25, 0
      %p170 = por %p168, %p169
      %p171 = scmp.ne.s32.totalorder %s157, %s158
      %p172 = scmp.eq.s32.totalorder %s26, 1
      %p173 = por %p171, %p172
      %p175 = scmp.ne.s32.totalorder %s158, %s174
      %p176 = scmp.eq.s32.totalorder %s26, 0
      %p177 = por %p175, %p176
      %s178 = ssub.s32 %s27, %s39
      %s179 = ssub.s32 %s28, %s35
      %s180 = sor.u32 %s178, %s179
      %p181 = scmp.eq.s32.totalorder %s180, 0
      %s183 = sadd.s32 %s182, 1
      %s184 = scalar_select %p181, %s182, %s183
      %p187 = pneg %p181
      %p188 = scmp.eq.s32.totalorder %s20, 1
      %p189 = por %p187, %p188
      %p190 = scmp.ne.s32.totalorder %s182, %s185
      %p191 = scmp.eq.s32.totalorder %s20, 0
      %p192 = por %p190, %p191
      %p193 = scmp.ne.s32.totalorder %s182, %s185
      %p194 = scmp.eq.s32.totalorder %s25, 1
      %p195 = por %p193, %p194
      %p196 = scmp.ne.s32.totalorder %s185, %s186
      %p197 = scmp.eq.s32.totalorder %s25, 0
      %p198 = por %p196, %p197
      %p199 = scmp.ne.s32.totalorder %s185, %s186
      %p200 = scmp.eq.s32.totalorder %s26, 1
      %p201 = por %p199, %p200
      %p203 = scmp.ne.s32.totalorder %s186, %s202
      %p204 = scmp.eq.s32.totalorder %s26, 0
      %p205 = por %p203, %p204
      %p206 = scmp.le.s32.totalorder 1, %s20
      %p207 = scmp.lt.s32.totalorder %s20, 3
      %p208 = pnand %p206, %p207
      %p209 = pneg %p208
      // Predicated region
      $region9: #{tpu_custom_call.1} parent=5 // pred_check
        _
      $region10: #{tpu_custom_call.1} parent=5 // pred_check_branch
        %211 = sbr.rel (%p208) target = $region12
      $region11: #{tpu_custom_call.1} parent=5 // pred_region
        %s212 = ssub.s32 %s20, 1
        // Predicated region
        $region13: #{tpu_custom_call.1} parent=11 // pred_check
          %p213 = pneg %p81
        $region14: #{tpu_custom_call.1} parent=11 // pred_check_branch
          %215 = sbr.rel (%p213) target = $region16
        $region15: #{tpu_custom_call.1} parent=11 // pred_region
          %s217 = ssub.s32 256, 256
          %218 = vsyncadd [#allocation6], %s217
          %s219 = sshll.u32 [#allocation5], 4
          %s220 = int_to_ptr.vmem [resolvable:$true] %s219
          %225 = dma.hbm_to_vmem [thread:$0]  %s1, 256, %s220, [#allocation6], 128, 128, 8
        $region16: #{tpu_custom_call.1} parent=11 // pred_fallthru
          _
        // Predicated region
        $region17: #{tpu_custom_call.1} parent=11 // pred_check
          %p226 = pneg %p102
        $region18: #{tpu_custom_call.1} parent=11 // pred_check_branch
          %228 = sbr.rel (%p226) target = $region20
        $region19: #{tpu_custom_call.1} parent=11 // pred_region
          %s230 = ssub.s32 1024, 1024
          %231 = vsyncadd [#allocation6], %s230
          %s232 = sshll.u32 [#allocation7], 4
          %s233 = int_to_ptr.vmem [resolvable:$true] %s232
          %238 = dma.hbm_to_vmem [thread:$0]  %s2, 1024, %s233, [#allocation6], 128, 128, 8
        $region20: #{tpu_custom_call.1} parent=11 // pred_fallthru
          _
        // Predicated region
        $region21: #{tpu_custom_call.1} parent=11 // pred_check
          %p239 = pneg %p123
        $region22: #{tpu_custom_call.1} parent=11 // pred_check_branch
          %241 = sbr.rel (%p239) target = $region24
        $region23: #{tpu_custom_call.1} parent=11 // pred_region
          %s243 = ssub.s32 512, 512
          %244 = vsyncadd [#allocation9], %s243
          %s245 = sshll.u32 [#allocation8], 4
          %s246 = int_to_ptr.vmem [resolvable:$true] %s245
          %251 = dma.hbm_to_vmem [thread:$0]  %s3, 512, %s246, [#allocation9], 128, 128, 8
        $region24: #{tpu_custom_call.1} parent=11 // pred_fallthru
          _
        // Predicated region
        $region25: #{tpu_custom_call.1} parent=11 // pred_check
          %p252 = pneg %p144
        $region26: #{tpu_custom_call.1} parent=11 // pred_check_branch
          %254 = sbr.rel (%p252) target = $region28
        $region27: #{tpu_custom_call.1} parent=11 // pred_region
          %s256 = ssub.s32 128, 128
          %257 = vsyncadd [#allocation9], %s256
          %s259 = sshll.u32 [#allocation10], 4
          %s260 = int_to_ptr.vmem [resolvable:$true] %s259
          %262 = dma.hbm_to_vmem [thread:$0]  %s4, 128, %s260, [#allocation9]
        $region28: #{tpu_custom_call.1} parent=11 // pred_fallthru
          _
        // Predicated region
        $region29: #{tpu_custom_call.1} parent=11 // pred_check
          %p263 = pneg %p170
        $region30: #{tpu_custom_call.1} parent=11 // pred_check_branch
          %265 = sbr.rel (%p263) target = $region32
        $region31: #{tpu_custom_call.1} parent=11 // pred_region
          %p266 = scmp.lt.s32.totalorder %s30, 0
          %s267 = scalar_select %p266, %s30, 0
          %s268 = smul.addr %s267, 8
          %s269 = scalar_lea.vmem %s5, %s268
        $region32: #{tpu_custom_call.1} parent=11 // pred_fallthru
          _
      $region12: #{tpu_custom_call.1} parent=5 // pred_fallthru
        _
      %p270 = scmp.lt.s32.totalorder %s20, 2
      // Predicated region
      $region33: #{tpu_custom_call.1} parent=5 // pred_check
        %p271 = pneg %p270
      $region34: #{tpu_custom_call.1} parent=5 // pred_check_branch
        %273 = sbr.rel (%p271) target = $region36
      $region35: #{tpu_custom_call.1} parent=5 // pred_region
        // Predicated region
        $region37: #{tpu_custom_call.1} parent=35 // pred_check
          %p274 = pneg %p54
        $region38: #{tpu_custom_call.1} parent=35 // pred_check_branch
          %276 = sbr.rel (%p274) target = $region40
        $region39: #{tpu_custom_call.1} parent=35 // pred_region
          %s277 = sand.u32 %s44, 1
          %s278 = scalar_lea.sflag [#allocation3], %s277
          %s279 = sand.u32 %s44, 1
          %s280 = smul.addr %s279, 16
          %s281 = scalar_lea.vmem [#allocation2], %s280
          %s283 = ssub.s32 256, 256
          %284 = vsyncadd %s278, %s283
          %s285 = smul.addr %s28, 2
          %s286 = smul.addr %s27, 2
          %s287 = sadd.s32 %s285, %s286
          %s288 = smul.addr %s287, 128
          %s289 = scalar_lea.hbm %s0, %s288
          %s290 = sshll.u32 %s281, 4
          %s291 = int_to_ptr.vmem [resolvable:$true] %s290
          %296 = dma.hbm_to_vmem [thread:$0]  %s289, 256, %s291, %s278, 128, 128, 8
        $region40: #{tpu_custom_call.1} parent=35 // pred_fallthru
          _
      $region36: #{tpu_custom_call.1} parent=5 // pred_fallthru
        _
      %p297 = scmp.le.s32.totalorder 1, %s20
      %p298 = scmp.lt.s32.totalorder %s20, 3
      %p299 = pnand %p297, %p298
      %p300 = pneg %p299
      // Predicated region
      $region41: #{tpu_custom_call.1} parent=5 // pred_check
        _
      $region42: #{tpu_custom_call.1} parent=5 // pred_check_branch
        %302 = sbr.rel (%p299) target = $region44
      $region43: #{tpu_custom_call.1} parent=5 // pred_region
        %s303 = ssub.s32 %s20, 1
        %s304 = sand.u32 %s47, 1
        %s305 = scalar_lea.sflag [#allocation3], %s304
        %s306 = sand.u32 %s47, 1
        %s307 = smul.addr %s306, 16
        %s308 = scalar_lea.vmem [#allocation2], %s307
        // Predicated region
        $region45: #{tpu_custom_call.1} parent=43 // pred_check
          %p309 = pneg %p60
        $region46: #{tpu_custom_call.1} parent=43 // pred_check_branch
          %311 = sbr.rel (%p309) target = $region48
        $region47: #{tpu_custom_call.1} parent=43 // pred_region
          %312 = dma.done %s305, 256
        $region48: #{tpu_custom_call.1} parent=43 // pred_fallthru
          _
        // Predicated region
        $region49: #{tpu_custom_call.1} parent=43 // pred_check
          %p313 = pneg %p81
        $region50: #{tpu_custom_call.1} parent=43 // pred_check_branch
          %315 = sbr.rel (%p313) target = $region52
        $region51: #{tpu_custom_call.1} parent=43 // pred_region
          %316 = dma.done [#allocation6], 256
        $region52: #{tpu_custom_call.1} parent=43 // pred_fallthru
          _
        // Predicated region
        $region53: #{tpu_custom_call.1} parent=43 // pred_check
          %p317 = pneg %p102
        $region54: #{tpu_custom_call.1} parent=43 // pred_check_branch
          %319 = sbr.rel (%p317) target = $region56
        $region55: #{tpu_custom_call.1} parent=43 // pred_region
          %320 = dma.done [#allocation6], 1024
        $region56: #{tpu_custom_call.1} parent=43 // pred_fallthru
          _
        // Predicated region
        $region57: #{tpu_custom_call.1} parent=43 // pred_check
          %p321 = pneg %p123
        $region58: #{tpu_custom_call.1} parent=43 // pred_check_branch
          %323 = sbr.rel (%p321) target = $region60
        $region59: #{tpu_custom_call.1} parent=43 // pred_region
          %324 = dma.done [#allocation9], 512
        $region60: #{tpu_custom_call.1} parent=43 // pred_fallthru
          _
        // Predicated region
        $region61: #{tpu_custom_call.1} parent=43 // pred_check
          %p325 = pneg %p144
        $region62: #{tpu_custom_call.1} parent=43 // pred_check_branch
          %327 = sbr.rel (%p325) target = $region64
        $region63: #{tpu_custom_call.1} parent=43 // pred_region
          %328 = dma.done [#allocation9], 128
        $region64: #{tpu_custom_call.1} parent=43 // pred_fallthru
          _
        %s329 = sand.u32 %s47, 1
        %s330 = scalar_lea.sflag [#allocation3], %s329
        %s331 = sand.u32 %s47, 1
        %s332 = smul.addr %s331, 16
        %s333 = scalar_lea.vmem [#allocation2], %s332
        %p334 = pneg %p60
        %p335 = pneg %p57
        %p336 = pneg %p81
        %p337 = pneg %p78
        %p338 = pneg %p102
        %p339 = pneg %p99
        %p340 = pneg %p123
        %p341 = pneg %p120
        %p342 = pneg %p144
        %p343 = pneg %p141
        %p344 = scmp.lt.s32.totalorder %s30, 0
        %s345 = scalar_select %p344, %s30, 0
        %s346 = smul.addr %s345, 8
        %s347 = scalar_lea.vmem %s5, %s346
        %p348 = pneg %p170
        %p349 = pneg %p167
        %p350 = pneg %p198
        %p351 = pneg %p195
        %s352 = sand.u32 %s185, 1
        %s353 = scalar_lea.sflag [#allocation4], %s352
        %s354 = sand.u32 %s185, 1
        %s355 = smul.addr %s354, 8
        %s356 = scalar_lea.vmem [#allocation11], %s355
        %p357 = scmp.lt.s32.totalorder %s30, 0
        %s358 = scalar_select %p357, %s30, 0
        %s359 = smul.addr %s358, 8
        %s360 = scalar_lea.vmem %s5, %s359
        %v361 = vld [vmem:[%s308] sm:$0xff]
        %v362 = vld [vmem:[%s308 + $0x8] sm:$0xff]
        %v363 = vld [vmem:[#allocation5] sm:$0xff]
        %v364 = vld [vmem:[#allocation5 + $0x8] sm:$0xff]
        %vm365 = vcmask 130048
        %v367 = vsel %vm365, %v363, 0
        %v370 = vsel %vm365, %v364, 0
        %372 = vmatprep.subr.mxu0 0.0
        %373 = vmatpush1.msra.mxu0 %v361
        %374 = vmatprep.subr.mxu0 0.0
        %375 = vmatpush1.msra.mxu0 %v362
        %376 = vmatprep.subr.mxu0 0.0
        %377 = vmatpush1.msra.mxu0 0.0
        %378 = vmatprep.subr.mxu0 0.0
        %379 = vmatpush1.msra.mxu0 0.0
        %380 = vmatprep.subr.mxu0 0.0
        %381 = vmatpush1.msra.mxu0 0.0
        %382 = vmatprep.subr.mxu0 0.0
        %383 = vmatpush1.msra.mxu0 0.0
        %384 = vmatprep.subr.mxu0 0.0
        %385 = vmatpush1.msra.mxu0 0.0
        %386 = vmatprep.subr.mxu0 0.0
        %387 = vmatpush1.msra.mxu0 0.0
        %388 = vmatprep.subr.mxu0 0.0
        %389 = vmatpush1.msra.mxu0 0.0
        %390 = vmatprep.subr.mxu0 0.0
        %391 = vmatpush1.msra.mxu0 0.0
        %392 = vmatprep.subr.mxu0 0.0
        %393 = vmatpush1.msra.mxu0 0.0
        %394 = vmatprep.subr.mxu0 0.0
        %395 = vmatpush1.msra.mxu0 0.0
        %396 = vmatprep.subr.mxu0 0.0
        %397 = vmatpush1.msra.mxu0 0.0
        %398 = vmatprep.subr.mxu0 0.0
        %399 = vmatpush1.msra.mxu0 0.0
        %400 = vmatprep.subr.mxu0 0.0
        %401 = vmatpush1.msra.mxu0 0.0
        %402 = vmatprep.subr.mxu0 0.0
        %403 = vmatpush1.msra.mxu0 0.0
        %404 = vmatprep.subr.mxu0 0.0
        %405 = vmatpush1.msra.mxu0 0.0
        %406 = vmatprep.subr.mxu0 0.0
        %407 = vmatpush1.msra.mxu0 0.0
        %408 = vmatprep.subr.mxu0 0.0
        %409 = vmatpush1.msra.mxu0 0.0
        %410 = vmatprep.subr.mxu0 0.0
        %411 = vmatpush1.msra.mxu0 0.0
        %412 = vmatprep.subr.mxu0 0.0
        %413 = vmatpush1.msra.mxu0 0.0
        %414 = vmatprep.subr.mxu0 0.0
        %415 = vmatpush1.msra.mxu0 0.0
        %416 = vmatprep.subr.mxu0 0.0
        %417 = vmatpush1.msra.mxu0 0.0
        %418 = vmatprep.subr.mxu0 0.0
        %419 = vmatpush1.msra.mxu0 0.0
        %420 = vmatprep.subr.mxu0 0.0
        %421 = vmatpush1.msra.mxu0 0.0
        %422 = vmatprep.subr.mxu0 0.0
        %423 = vmatpush1.msra.mxu0 0.0
        %424 = vmatprep.subr.mxu0 0.0
        %425 = vmatpush1.msra.mxu0 0.0
        %426 = vmatprep.subr.mxu0 0.0
        %427 = vmatpush1.msra.mxu0 0.0
        %428 = vmatprep.subr.mxu0 0.0
        %429 = vmatpush1.msra.mxu0 0.0
        %430 = vmatprep.subr.mxu0 0.0
        %431 = vmatpush1.msra.mxu0 0.0
        %432 = vmatprep.subr.mxu0 0.0
        %433 = vmatpush1.msra.mxu0 0.0
        %434 = vmatprep.subr.mxu0 0.0
        %435 = vmatpush1.msra.mxu0 0.0
        %436 = vmatprep.mubr.f32.mxu0 0.0
        %437 = vmatmul.mubr.f32.gmra.mrb[0].mxu0 %v367
        %v438 = vpop.f32.mrb[0].mxu0
        %v439 = vadd.f32 0.0, %v438
        %v440 = vpop.f32.mrb[0].mxu0
        %441 = vmatprep.mubr.f32.mxu0 0.0
        %442 = vmatmul.mubr.f32.gmra.mrb[0].mxu0 %v370
        %v443 = vpop.f32.mrb[0].mxu0
        %v444 = vadd.f32 0.0, %v443
        %v445 = vpop.f32.mrb[0].mxu0
        %446 = vdwg.mxu0
        %v447 = vld [vmem:[#allocation7] sm:$0xff]
        %v448 = vld [vmem:[#allocation7 + $0x8] sm:$0xff]
        %v449 = vld [vmem:[#allocation7 + $0x10] sm:$0xff]
        %v450 = vld [vmem:[#allocation7 + $0x18] sm:$0xff]
        %v451 = vld [vmem:[#allocation7 + $0x20] sm:$0xff]
        %v452 = vld [vmem:[#allocation7 + $0x28] sm:$0xff]
        %v453 = vld [vmem:[#allocation7 + $0x30] sm:$0xff]
        %v454 = vld [vmem:[#allocation7 + $0x38] sm:$0xff]
        %vm455 = vcmask 523264
        %v457 = vsel %vm455, %v439, 0
        %v460 = vsel %vm455, %v444, 0
        %462 = vmatprep.subr.mxu0 0.0
        %463 = vmatpush1.msra.mxu0 %v447
        %464 = vmatprep.subr.mxu0 0.0
        %465 = vmatpush1.msra.mxu0 %v448
        %466 = vmatprep.subr.mxu0 0.0
        %467 = vmatpush1.msra.mxu0 %v449
        %468 = vmatprep.subr.mxu0 0.0
        %469 = vmatpush1.msra.mxu0 %v450
        %470 = vmatprep.subr.mxu0 0.0
        %471 = vmatpush1.msra.mxu0 %v451
        %472 = vmatprep.subr.mxu0 0.0
        %473 = vmatpush1.msra.mxu0 %v452
        %474 = vmatprep.subr.mxu0 0.0
        %475 = vmatpush1.msra.mxu0 %v453
        %476 = vmatprep.subr.mxu0 0.0
        %477 = vmatpush1.msra.mxu0 %v454
        %478 = vmatprep.subr.mxu0 0.0
        %479 = vmatpush1.msra.mxu0 0.0
        %480 = vmatprep.subr.mxu0 0.0
        %481 = vmatpush1.msra.mxu0 0.0
        %482 = vmatprep.subr.mxu0 0.0
        %483 = vmatpush1.msra.mxu0 0.0
        %484 = vmatprep.subr.mxu0 0.0
        %485 = vmatpush1.msra.mxu0 0.0
        %486 = vmatprep.subr.mxu0 0.0
        %487 = vmatpush1.msra.mxu0 0.0
        %488 = vmatprep.subr.mxu0 0.0
        %489 = vmatpush1.msra.mxu0 0.0
        %490 = vmatprep.subr.mxu0 0.0
        %491 = vmatpush1.msra.mxu0 0.0
        %492 = vmatprep.subr.mxu0 0.0
        %493 = vmatpush1.msra.mxu0 0.0
        %494 = vmatprep.subr.mxu0 0.0
        %495 = vmatpush1.msra.mxu0 0.0
        %496 = vmatprep.subr.mxu0 0.0
        %497 = vmatpush1.msra.mxu0 0.0
        %498 = vmatprep.subr.mxu0 0.0
        %499 = vmatpush1.msra.mxu0 0.0
        %500 = vmatprep.subr.mxu0 0.0
        %501 = vmatpush1.msra.mxu0 0.0
        %502 = vmatprep.subr.mxu0 0.0
        %503 = vmatpush1.msra.mxu0 0.0
        %504 = vmatprep.subr.mxu0 0.0
        %505 = vmatpush1.msra.mxu0 0.0
        %506 = vmatprep.subr.mxu0 0.0
        %507 = vmatpush1.msra.mxu0 0.0
        %508 = vmatprep.subr.mxu0 0.0
        %509 = vmatpush1.msra.mxu0 0.0
        %510 = vmatprep.subr.mxu0 0.0
        %511 = vmatpush1.msra.mxu0 0.0
        %512 = vmatprep.subr.mxu0 0.0
        %513 = vmatpush1.msra.mxu0 0.0
        %514 = vmatprep.subr.mxu0 0.0
        %515 = vmatpush1.msra.mxu0 0.0
        %516 = vmatprep.subr.mxu0 0.0
        %517 = vmatpush1.msra.mxu0 0.0
        %518 = vmatprep.subr.mxu0 0.0
        %519 = vmatpush1.msra.mxu0 0.0
        %520 = vmatprep.subr.mxu0 0.0
        %521 = vmatpush1.msra.mxu0 0.0
        %522 = vmatprep.subr.mxu0 0.0
        %523 = vmatpush1.msra.mxu0 0.0
        %524 = vmatprep.subr.mxu0 0.0
        %525 = vmatpush1.msra.mxu0 0.0
        %526 = vmatprep.mubr.f32.mxu0 0.0
        %527 = vmatmul.mubr.f32.gmra.mrb[0].mxu0 %v457
        %v528 = vpop.f32.mrb[0].mxu0
        %v529 = vadd.f32 0.0, %v528
        %v530 = vpop.f32.mrb[0].mxu0
        %531 = vmatprep.mubr.f32.mxu0 0.0
        %532 = vmatmul.mubr.f32.gmra.mrb[0].mxu0 %v460
        %v533 = vpop.f32.mrb[0].mxu0
        %v534 = vadd.f32 0.0, %v533
        %v535 = vpop.f32.mrb[0].mxu0
        %536 = vdwg.mxu0
        %538 = vrot.lane.b32.xlu0 %v534, 96
        %v539 = vpop.permute.xlu0 %538
        %v541 = vsub.f32 %v529, %v539
        %542 = vrot.lane.b32.xlu0 %v534, 32
        %v543 = vpop.permute.xlu0 %542
        %v545 = vadd.f32 %v529, %v543
        %v546 = vld [vmem:[%s360] sm:$0xff]
        %s547 = scalar_lea.vmem %s360, 8
        %v548 = vld [vmem:[%s547] sm:$0xff]
        %v549 = vmul.f32 %v541, %v546
        %551 = vrot.lane.b32.xlu0 %v548, 32
        %v552 = vpop.permute.xlu0 %551
        %v554 = vmul.f32 %v545, %v552
        %556 = vrot.lane.b32.xlu0 %v554, 96
        %v557 = vpop.permute.xlu0 %556
        %v559 = vsub.f32 %v549, %v557
        %v560 = vmul.f32 %v541, %v548
        %562 = vrot.lane.b32.xlu0 %v546, 32
        %v563 = vpop.permute.xlu0 %562
        %v565 = vmul.f32 %v545, %v563
        %567 = vrot.lane.b32.xlu0 %v565, 96
        %v568 = vpop.permute.xlu0 %567
        %v570 = vadd.f32 %v560, %v568
        %v571 = vld [vmem:[#allocation8] sm:$0xff]
        %v572 = vld [vmem:[#allocation8 + $0x8] sm:$0xff]
        %v573 = vld [vmem:[#allocation8 + $0x10] sm:$0xff]
        %v574 = vld [vmem:[#allocation8 + $0x18] sm:$0xff]
        %vm575 = vcmask 261120
        %v577 = vsel %vm575, %v559, 0
        %v580 = vsel %vm575, %v570, 0
        %582 = vmatprep.subr.mxu0 0.0
        %583 = vmatpush1.msra.mxu0 %v571
        %584 = vmatprep.subr.mxu0 0.0
        %585 = vmatpush1.msra.mxu0 %v572
        %586 = vmatprep.subr.mxu0 0.0
        %587 = vmatpush1.msra.mxu0 %v573
        %588 = vmatprep.subr.mxu0 0.0
        %589 = vmatpush1.msra.mxu0 %v574
        %590 = vmatprep.subr.mxu0 0.0
        %591 = vmatpush1.msra.mxu0 0.0
        %592 = vmatprep.subr.mxu0 0.0
        %593 = vmatpush1.msra.mxu0 0.0
        %594 = vmatprep.subr.mxu0 0.0
        %595 = vmatpush1.msra.mxu0 0.0
        %596 = vmatprep.subr.mxu0 0.0
        %597 = vmatpush1.msra.mxu0 0.0
        %598 = vmatprep.subr.mxu0 0.0
        %599 = vmatpush1.msra.mxu0 0.0
        %600 = vmatprep.subr.mxu0 0.0
        %601 = vmatpush1.msra.mxu0 0.0
        %602 = vmatprep.subr.mxu0 0.0
        %603 = vmatpush1.msra.mxu0 0.0
        %604 = vmatprep.subr.mxu0 0.0
        %605 = vmatpush1.msra.mxu0 0.0
        %606 = vmatprep.subr.mxu0 0.0
        %607 = vmatpush1.msra.mxu0 0.0
        %608 = vmatprep.subr.mxu0 0.0
        %609 = vmatpush1.msra.mxu0 0.0
        %610 = vmatprep.subr.mxu0 0.0
        %611 = vmatpush1.msra.mxu0 0.0
        %612 = vmatprep.subr.mxu0 0.0
        %613 = vmatpush1.msra.mxu0 0.0
        %614 = vmatprep.subr.mxu0 0.0
        %615 = vmatpush1.msra.mxu0 0.0
        %616 = vmatprep.subr.mxu0 0.0
        %617 = vmatpush1.msra.mxu0 0.0
        %618 = vmatprep.subr.mxu0 0.0
        %619 = vmatpush1.msra.mxu0 0.0
        %620 = vmatprep.subr.mxu0 0.0
        %621 = vmatpush1.msra.mxu0 0.0
        %622 = vmatprep.subr.mxu0 0.0
        %623 = vmatpush1.msra.mxu0 0.0
        %624 = vmatprep.subr.mxu0 0.0
        %625 = vmatpush1.msra.mxu0 0.0
        %626 = vmatprep.subr.mxu0 0.0
        %627 = vmatpush1.msra.mxu0 0.0
        %628 = vmatprep.subr.mxu0 0.0
        %629 = vmatpush1.msra.mxu0 0.0
        %630 = vmatprep.subr.mxu0 0.0
        %631 = vmatpush1.msra.mxu0 0.0
        %632 = vmatprep.subr.mxu0 0.0
        %633 = vmatpush1.msra.mxu0 0.0
        %634 = vmatprep.subr.mxu0 0.0
        %635 = vmatpush1.msra.mxu0 0.0
        %636 = vmatprep.subr.mxu0 0.0
        %637 = vmatpush1.msra.mxu0 0.0
        %638 = vmatprep.subr.mxu0 0.0
        %639 = vmatpush1.msra.mxu0 0.0
        %640 = vmatprep.subr.mxu0 0.0
        %641 = vmatpush1.msra.mxu0 0.0
        %642 = vmatprep.subr.mxu0 0.0
        %643 = vmatpush1.msra.mxu0 0.0
        %644 = vmatprep.subr.mxu0 0.0
        %645 = vmatpush1.msra.mxu0 0.0
        %646 = vmatprep.mubr.f32.mxu0 0.0
        %647 = vmatmul.mubr.f32.gmra.mrb[0].mxu0 %v577
        %v648 = vpop.f32.mrb[0].mxu0
        %v649 = vadd.f32 0.0, %v648
        %v650 = vpop.f32.mrb[0].mxu0
        %651 = vmatprep.mubr.f32.mxu0 0.0
        %652 = vmatmul.mubr.f32.gmra.mrb[0].mxu0 %v580
        %v653 = vpop.f32.mrb[0].mxu0
        %v654 = vadd.f32 0.0, %v653
        %v655 = vpop.f32.mrb[0].mxu0
        %656 = vdwg.mxu0
        %658 = vrot.lane.b32.xlu0 %v654, 96
        %v659 = vpop.permute.xlu0 %658
        %v661 = vsub.f32 %v649, %v659
        %662 = vrot.lane.b32.xlu0 %v654, 32
        %v663 = vpop.permute.xlu0 %662
        %v665 = vadd.f32 %v649, %v663
        %667 = vrot.lane.b32.xlu0 %v665, 96
        %v668 = vpop.permute.xlu0 %667
        %v670 = vld [vmem:[#allocation10] sm:$0xff]
        %v672 = vsel %vm365, %v670, 0
        %674 = vmatprep.subr.mxu0 0.0
        %675 = vmatpush1.msra.mxu0 %v661
        %676 = vmatprep.subr.mxu0 0.0
        %677 = vmatpush1.msra.mxu0 %v668
        %678 = vmatprep.subr.mxu0 0.0
        %679 = vmatpush1.msra.mxu0 0.0
        %680 = vmatprep.subr.mxu0 0.0
        %681 = vmatpush1.msra.mxu0 0.0
        %682 = vmatprep.subr.mxu0 0.0
        %683 = vmatpush1.msra.mxu0 0.0
        %684 = vmatprep.subr.mxu0 0.0
        %685 = vmatpush1.msra.mxu0 0.0
        %686 = vmatprep.subr.mxu0 0.0
        %687 = vmatpush1.msra.mxu0 0.0
        %688 = vmatprep.subr.mxu0 0.0
        %689 = vmatpush1.msra.mxu0 0.0
        %690 = vmatprep.subr.mxu0 0.0
        %691 = vmatpush1.msra.mxu0 0.0
        %692 = vmatprep.subr.mxu0 0.0
        %693 = vmatpush1.msra.mxu0 0.0
        %694 = vmatprep.subr.mxu0 0.0
        %695 = vmatpush1.msra.mxu0 0.0
        %696 = vmatprep.subr.mxu0 0.0
        %697 = vmatpush1.msra.mxu0 0.0
        %698 = vmatprep.subr.mxu0 0.0
        %699 = vmatpush1.msra.mxu0 0.0
        %700 = vmatprep.subr.mxu0 0.0
        %701 = vmatpush1.msra.mxu0 0.0
        %702 = vmatprep.subr.mxu0 0.0
        %703 = vmatpush1.msra.mxu0 0.0
        %704 = vmatprep.subr.mxu0 0.0
        %705 = vmatpush1.msra.mxu0 0.0
        %706 = vmatprep.subr.mxu0 0.0
        %707 = vmatpush1.msra.mxu0 0.0
        %708 = vmatprep.subr.mxu0 0.0
        %709 = vmatpush1.msra.mxu0 0.0
        %710 = vmatprep.subr.mxu0 0.0
        %711 = vmatpush1.msra.mxu0 0.0
        %712 = vmatprep.subr.mxu0 0.0
        %713 = vmatpush1.msra.mxu0 0.0
        %714 = vmatprep.subr.mxu0 0.0
        %715 = vmatpush1.msra.mxu0 0.0
        %716 = vmatprep.subr.mxu0 0.0
        %717 = vmatpush1.msra.mxu0 0.0
        %718 = vmatprep.subr.mxu0 0.0
        %719 = vmatpush1.msra.mxu0 0.0
        %720 = vmatprep.subr.mxu0 0.0
        %721 = vmatpush1.msra.mxu0 0.0
        %722 = vmatprep.subr.mxu0 0.0
        %723 = vmatpush1.msra.mxu0 0.0
        %724 = vmatprep.subr.mxu0 0.0
        %725 = vmatpush1.msra.mxu0 0.0
        %726 = vmatprep.subr.mxu0 0.0
        %727 = vmatpush1.msra.mxu0 0.0
        %728 = vmatprep.subr.mxu0 0.0
        %729 = vmatpush1.msra.mxu0 0.0
        %730 = vmatprep.subr.mxu0 0.0
        %731 = vmatpush1.msra.mxu0 0.0
        %732 = vmatprep.subr.mxu0 0.0
        %733 = vmatpush1.msra.mxu0 0.0
        %734 = vmatprep.subr.mxu0 0.0
        %735 = vmatpush1.msra.mxu0 0.0
        %736 = vmatprep.subr.mxu0 0.0
        %737 = vmatpush1.msra.mxu0 0.0
        %738 = vmatprep.mubr.f32.mxu0 0.0
        %739 = vmatmul.mubr.f32.gmra.mrb[0].mxu0 %v672
        %v740 = vpop.f32.mrb[0].mxu0
        %v741 = vadd.f32 0.0, %v740
        %v742 = vpop.f32.mrb[0].mxu0
        %743 = vdwg.mxu0
        %744 = vst.msk [vmem:[%s356] sm:$0xff] %vm575, %v741
        %s745 = sand.u32 %s185, 1
        %s746 = scalar_lea.sflag [#allocation4], %s745
        %s747 = sand.u32 %s185, 1
        %s748 = smul.addr %s747, 8
        %s749 = scalar_lea.vmem [#allocation11], %s748
        // Predicated region
        $region65: #{tpu_custom_call.1} parent=43 // pred_check
          %p750 = pneg %p195
        $region66: #{tpu_custom_call.1} parent=43 // pred_check_branch
          %752 = sbr.rel (%p750) target = $region68
        $region67: #{tpu_custom_call.1} parent=43 // pred_region
          %s754 = ssub.s32 128, 128
          %755 = vsyncadd %s746, %s754
          %s756 = sadd.s32 %s30, %s29
          %s757 = smul.addr %s756, 128
          %s758 = scalar_lea.hbm %s6, %s757
          %s760 = sshll.u32 %s749, 4
          %s761 = int_to_ptr.vmem [resolvable:$true] %s760
          %763 = dma.vmem_to_hbm [thread:$0]  %s761, 128, %s758, %s746
        $region68: #{tpu_custom_call.1} parent=43 // pred_fallthru
          _
      $region44: #{tpu_custom_call.1} parent=5 // pred_fallthru
        _
      %p764 = scmp.le.s32.totalorder 2, %s20
      // Predicated region
      $region69: #{tpu_custom_call.1} parent=5 // pred_check
        %p765 = pneg %p764
      $region70: #{tpu_custom_call.1} parent=5 // pred_check_branch
        %767 = sbr.rel (%p765) target = $region72
      $region71: #{tpu_custom_call.1} parent=5 // pred_region
        %s768 = ssub.s32 %s20, 2
        // Predicated region
        $region73: #{tpu_custom_call.1} parent=71 // pred_check
          %p769 = pneg %p201
        $region74: #{tpu_custom_call.1} parent=71 // pred_check_branch
          %771 = sbr.rel (%p769) target = $region76
        $region75: #{tpu_custom_call.1} parent=71 // pred_region
          %s772 = sand.u32 %s186, 1
          %s773 = scalar_lea.sflag [#allocation4], %s772
          %s774 = sand.u32 %s186, 1
          %s775 = smul.addr %s774, 8
          %s776 = scalar_lea.vmem [#allocation11], %s775
          %777 = dma.done %s773, 128
        $region76: #{tpu_custom_call.1} parent=71 // pred_fallthru
          _
      $region72: #{tpu_custom_call.1} parent=5 // pred_fallthru
        _
    $region6: #{tpu_custom_call.1} parent=1 // loop_footer
      %s24 = sadd.s32 1, %s20
    $region7: #{tpu_custom_call.1} parent=1 // loop_footer_branch
      %19 = sbr.rel target = $region3
    $region8: #{tpu_custom_call.1} parent=1 // loop_exit
      _
    %778 = vsyncpa [#allocation3], 1
    %s779 = scalar_lea.sflag [#allocation3], 1
    %780 = vsyncpa %s779, 1
    %781 = vsyncpa [#allocation6], 1
    %782 = vsyncpa [#allocation9], 1
    %783 = vsyncpa [#allocation4], 1
    %s784 = scalar_lea.sflag [#allocation4], 1
    %785 = vsyncpa %s784, 1

</llo_original>
